<compile_context>
chip_gen: v7x
topology: tpu7x:2x2x1
jax: 0.10.0
libtpu: 0.0.40
codegen_flags: <defaults>
</compile_context>

<pallas_src>
import functools

import jax
import jax.numpy as jnp
from jax import lax
from jax.experimental import pallas as pl
from jax.experimental.pallas import tpu as pltpu

LANES = 128
MAX_TILE_ROWS = 2048  # 2048*128*4B = 1 MiB per input buffer (f32)


def _row_sum_kernel(x_ref, mean_out_ref, acc_ref, *, n_true):
    """Pass 1: accumulate per-row sum(x); finalize mean broadcast across lanes."""
    k = pl.program_id(1)
    nk = pl.num_programs(1)

    @pl.when(k == 0)
    def _():
        acc_ref[...] = jnp.zeros_like(acc_ref)

    x = x_ref[...].astype(jnp.float32)                     # (1, T, 128)
    acc_ref[...] += jnp.sum(x, axis=1, keepdims=True)      # lane partials (1,1,128)

    @pl.when(k == nk - 1)
    def _():
        total = jnp.sum(acc_ref[...], axis=2, keepdims=True)      # (1,1,1)
        mean = total * jnp.float32(1.0 / n_true)
        mean_out_ref[...] = jnp.broadcast_to(mean, mean_out_ref.shape)


def _centered_sums_kernel(mean_ref, x_ref, stats_ref, acc2_ref, acc3_ref, acc4_ref,
                          *, n_true, tile_rows, padded):
    """Pass 2: accumulate sum(d^2), sum(d^3), sum(d^4); finalize the 4 stats."""
    k = pl.program_id(1)
    nk = pl.num_programs(1)

    @pl.when(k == 0)
    def _():
        acc2_ref[...] = jnp.zeros_like(acc2_ref)
        acc3_ref[...] = jnp.zeros_like(acc3_ref)
        acc4_ref[...] = jnp.zeros_like(acc4_ref)

    x = x_ref[...].astype(jnp.float32)                     # (1, T, 128)
    d = x - mean_ref[...]                                  # broadcast (1,1,128)

    if padded:  # mask out zero-padded tail elements (static Python branch)
        r = lax.broadcasted_iota(jnp.int32, x.shape, 1)
        c = lax.broadcasted_iota(jnp.int32, x.shape, 2)
        idx = (k * tile_rows + r) * LANES + c
        d = jnp.where(idx < n_true, d, jnp.float32(0.0))

    # Explicit power chain -> stays on the VALU slot (no pow lowering).
    d2 = d * d
    d3 = d2 * d
    d4 = d2 * d2
    acc2_ref[...] += jnp.sum(d2, axis=1, keepdims=True)
    acc3_ref[...] += jnp.sum(d3, axis=1, keepdims=True)
    acc4_ref[...] += jnp.sum(d4, axis=1, keepdims=True)

    @pl.when(k == nk - 1)
    def _():
        s2 = jnp.sum(acc2_ref[...], axis=2, keepdims=True)  # (1,1,1)
        s3 = jnp.sum(acc3_ref[...], axis=2, keepdims=True)
        s4 = jnp.sum(acc4_ref[...], axis=2, keepdims=True)

        inv_n = jnp.float32(1.0 / n_true)
        inv_nm1 = jnp.float32(1.0 / (n_true - 1)) if n_true > 1 else jnp.float32(jnp.inf)

        var = s2 * inv_nm1                                  # torch.var ddof=1
        sigma = jnp.sqrt(var)
        sigma3 = sigma * var
        sigma4 = var * var
        # Reciprocals on the EUP slot (essentially free).
        skew = (s3 * inv_n) * pl.reciprocal(sigma3 + 1e-8, approx=True)
        kurt = (s4 * inv_n) * pl.reciprocal(sigma4 + 1e-8, approx=True)

        # Assemble one lane-dense (1,1,128) tile: lanes 0..3 = mean,var,skew,kurt.
        lane = lax.broadcasted_iota(jnp.int32, stats_ref.shape, 2)
        meanb = mean_ref[...]
        out = jnp.where(lane == 0, meanb,
              jnp.where(lane == 1, var,
              jnp.where(lane == 2, skew,
              jnp.where(lane == 3, kurt, jnp.float32(0.0)))))
        stats_ref[...] = out


@jax.jit
def _compute_moments(x_flat):
    """x_flat: (B, N) in native dtype -> (B, 4) f32 [mean, var, skew, kurt]."""
    B, N = x_flat.shape
    rows = -(-N // LANES)
    tile_rows = min(MAX_TILE_ROWS, ((rows + 7) // 8) * 8)   # multiple of 8 sublanes
    n_chunks = -(-rows // tile_rows)
    rows_pad = n_chunks * tile_rows
    total = rows_pad * LANES
    padded = total != N
    if padded:
        x_flat = jnp.pad(x_flat, ((0, 0), (0, total - N)))
    x3 = x_flat.reshape(B, rows_pad, LANES)

    grid = (B, n_chunks)
    cparams = pltpu.CompilerParams(dimension_semantics=("parallel", "arbitrary"))

    # Pass 1: per-row mean.
    mean3 = pl.pallas_call(
        functools.partial(_row_sum_kernel, n_true=N),
        out_shape=jax.ShapeDtypeStruct((B, 1, LANES), jnp.float32),
        grid=grid,
        in_specs=[pl.BlockSpec((1, tile_rows, LANES), lambda b, k: (b, k, 0))],
        out_specs=pl.BlockSpec((1, 1, LANES), lambda b, k: (b, 0, 0)),
        scratch_shapes=[pltpu.VMEM((1, 1, LANES), jnp.float32)],
        compiler_params=cparams,
    )(x3)

    # Pass 2: centered power sums + finalize.
    stats3 = pl.pallas_call(
        functools.partial(_centered_sums_kernel, n_true=N,
                          tile_rows=tile_rows, padded=padded),
        out_shape=jax.ShapeDtypeStruct((B, 1, LANES), jnp.float32),
        grid=grid,
        in_specs=[pl.BlockSpec((1, 1, LANES), lambda b, k: (b, 0, 0)),
                  pl.BlockSpec((1, tile_rows, LANES), lambda b, k: (b, k, 0))],
        out_specs=pl.BlockSpec((1, 1, LANES), lambda b, k: (b, 0, 0)),
        scratch_shapes=[pltpu.VMEM((1, 1, LANES), jnp.float32)] * 3,
        compiler_params=cparams,
    )(mean3, x3)

    return stats3[:, 0, :4]


class PrintMoments:
    """JAX/Pallas port of the PyTorch PrintMoments debug module."""

    def __init__(self, name: str = ""):
        self.name = name

    def __call__(self, x):
        B = x.shape[0]
        x_flat = x.reshape(B, -1)                 # native dtype, no f32 HBM copy
        stats = _compute_moments(x_flat)          # (B, 4) f32, hot path in Pallas
        avg = jnp.mean(stats, axis=0)             # batch average on device
        avg = jax.device_get(jax.block_until_ready(avg))   # single host transfer
        mean, variance, skewness, kurtosis = (float(v) for v in avg)

        # TODO(synk): host-side print has no Pallas equivalent; stays in the wrapper.
        if self.name:
            print(f"{self.name}: ")
        print(
            f"mean     = {mean: .4f}, \n"
            f"variance = {variance: .4f}, \n"
            f"skewness = {skewness: .4f}, \n"
            f"kurtosis = {kurtosis: .4f}"
        )
        print()
        return x  # identity passthrough, same as the PyTorch module


if __name__ == "__main__":
    key = jax.random.PRNGKey(0)
    # NCHW, small shapes consistent with a conv-style feature map.
    x = jax.random.normal(key, (2, 4, 16, 16), dtype=jnp.float32)

    module = PrintMoments(name="debug")
    out = module(x)
    out = jax.block_until_ready(out)

    assert out.shape == x.shape and out.dtype == x.dtype
    assert bool(jnp.all(out == x))

    # Tolerance-based check against a pure-JAX reference of the torch math.
    xf = x.reshape(x.shape[0], -1).astype(jnp.float32)
    n = xf.shape[1]
    mean_r = jnp.mean(xf, axis=1, keepdims=True)
    d = xf - mean_r
    d_mean = jnp.mean(d, axis=1, keepdims=True)
    var_r = jnp.sum((d - d_mean) ** 2, axis=1) / (n - 1)
    sigma_r = jnp.sqrt(var_r)
    skew_r = jnp.mean(d ** 3, axis=1) / (sigma_r ** 3 + 1e-8)
    kurt_r = jnp.mean(d ** 4, axis=1) / (sigma_r ** 4 + 1e-8)

    stats = jax.block_until_ready(_compute_moments(x.reshape(x.shape[0], -1)))
    assert bool(jnp.allclose(stats[:, 0], mean_r[:, 0], rtol=1e-5, atol=1e-5))
    assert bool(jnp.allclose(stats[:, 1], var_r, rtol=1e-4, atol=1e-5))
    assert bool(jnp.allclose(stats[:, 2], skew_r, rtol=1e-2, atol=1e-3))
    assert bool(jnp.allclose(stats[:, 3], kurt_r, rtol=1e-2, atol=1e-3))

    print("KERNEL_OK")
</pallas_src>

<mosaic_0001>
module attributes {stable_mosaic.version = 11 : i64} {
  func.func @_centered_sums_kernel(%arg0: i32, %arg1: i32, %arg2: memref<1x1x128xf32, #tpu.memory_space<vmem>>, %arg3: memref<1x8x128xf32, #tpu.memory_space<vmem>>, %arg4: memref<1x1x128xf32, #tpu.memory_space<vmem>>, %arg5: memref<1x1x128xf32, #tpu.memory_space<vmem>>, %arg6: memref<1x1x128xf32, #tpu.memory_space<vmem>>, %arg7: memref<1x1x128xf32, #tpu.memory_space<vmem>>) attributes {dimension_semantics = [#tpu.dimension_semantics<parallel>, #tpu.dimension_semantics<arbitrary>], iteration_bounds = array<i64: 2, 1>, scalar_prefetch = 0 : i64, scratch_operands = 3 : i64, tpu.core_type = #tpu.core_type<tc>, window_params = [{transform_indices = @transform_0, window_bounds = array<i64: 1, 1, 128>}, {transform_indices = @transform_1, window_bounds = array<i64: 1, 8, 128>}, {transform_indices = @transform_2, window_bounds = array<i64: 1, 1, 128>}]} {
    %c0_i32 = arith.constant 0 : i32
    %0 = arith.cmpi eq, %arg1, %c0_i32 : i32
    %1 = arith.extui %0 : i1 to i32
    %c0_i32_0 = arith.constant 0 : i32
    %2 = arith.cmpi ne, %1, %c0_i32_0 : i32
    scf.if %2 {
      %cst_28 = arith.constant 0.000000e+00 : f32
      %28 = vector.broadcast %cst_28 : f32 to vector<1x1x128xf32>
      %c0_29 = arith.constant 0 : index
      %c0_30 = arith.constant 0 : index
      %c0_31 = arith.constant 0 : index
      %29 = vector.load %arg5[%c0_29, %c0_30, %c0_31] : memref<1x1x128xf32, #tpu.memory_space<vmem>>, vector<1x1x128xf32>
      tpu.vector_store %arg5[%c0_29, %c0_30, %c0_31], %28 {strides = array<i32>} : memref<1x1x128xf32, #tpu.memory_space<vmem>>, vector<1x1x128xf32>,
      %cst_32 = arith.constant 0.000000e+00 : f32
      %30 = vector.broadcast %cst_32 : f32 to vector<1x1x128xf32>
      %c0_33 = arith.constant 0 : index
      %c0_34 = arith.constant 0 : index
      %c0_35 = arith.constant 0 : index
      %31 = vector.load %arg6[%c0_33, %c0_34, %c0_35] : memref<1x1x128xf32, #tpu.memory_space<vmem>>, vector<1x1x128xf32>
      tpu.vector_store %arg6[%c0_33, %c0_34, %c0_35], %30 {strides = array<i32>} : memref<1x1x128xf32, #tpu.memory_space<vmem>>, vector<1x1x128xf32>,
      %cst_36 = arith.constant 0.000000e+00 : f32
      %32 = vector.broadcast %cst_36 : f32 to vector<1x1x128xf32>
      %c0_37 = arith.constant 0 : index
      %c0_38 = arith.constant 0 : index
      %c0_39 = arith.constant 0 : index
      %33 = vector.load %arg7[%c0_37, %c0_38, %c0_39] : memref<1x1x128xf32, #tpu.memory_space<vmem>>, vector<1x1x128xf32>
      tpu.vector_store %arg7[%c0_37, %c0_38, %c0_39], %32 {strides = array<i32>} : memref<1x1x128xf32, #tpu.memory_space<vmem>>, vector<1x1x128xf32>,
    } else {
    }
    %c0 = arith.constant 0 : index
    %c0_1 = arith.constant 0 : index
    %c0_2 = arith.constant 0 : index
    %3 = vector.load %arg3[%c0, %c0_1, %c0_2] : memref<1x8x128xf32, #tpu.memory_space<vmem>>, vector<1x8x128xf32>
    %c0_3 = arith.constant 0 : index
    %c0_4 = arith.constant 0 : index
    %c0_5 = arith.constant 0 : index
    %4 = vector.load %arg2[%c0_3, %c0_4, %c0_5] : memref<1x1x128xf32, #tpu.memory_space<vmem>>, vector<1x1x128xf32>
    %5 = vector.broadcast %4 : vector<1x1x128xf32> to vector<1x8x128xf32>
    %6 = arith.subf %3, %5 : vector<1x8x128xf32>
    %7 = arith.mulf %6, %6 : vector<1x8x128xf32>
    %8 = arith.mulf %7, %6 : vector<1x8x128xf32>
    %9 = arith.mulf %7, %7 : vector<1x8x128xf32>
    %c0_6 = arith.constant 0 : index
    %c0_7 = arith.constant 0 : index
    %c0_8 = arith.constant 0 : index
    %10 = vector.load %arg5[%c0_6, %c0_7, %c0_8] : memref<1x1x128xf32, #tpu.memory_space<vmem>>, vector<1x1x128xf32>
    %cst = arith.constant dense<0.000000e+00> : vector<1x128xf32>
    %11 = vector.multi_reduction <add>, %7, %cst [1] : vector<1x8x128xf32> to vector<1x128xf32>
    %12 = vector.shape_cast %11 : vector<1x128xf32> to vector<1x1x128xf32>
    %13 = arith.addf %10, %12 : vector<1x1x128xf32>
    %c0_9 = arith.constant 0 : index
    %c0_10 = arith.constant 0 : index
    %c0_11 = arith.constant 0 : index
    %14 = vector.load %arg5[%c0_9, %c0_10, %c0_11] : memref<1x1x128xf32, #tpu.memory_space<vmem>>, vector<1x1x128xf32>
    tpu.vector_store %arg5[%c0_9, %c0_10, %c0_11], %13 {strides = array<i32>} : memref<1x1x128xf32, #tpu.memory_space<vmem>>, vector<1x1x128xf32>,
    %c0_12 = arith.constant 0 : index
    %c0_13 = arith.constant 0 : index
    %c0_14 = arith.constant 0 : index
    %15 = vector.load %arg6[%c0_12, %c0_13, %c0_14] : memref<1x1x128xf32, #tpu.memory_space<vmem>>, vector<1x1x128xf32>
    %cst_15 = arith.constant dense<0.000000e+00> : vector<1x128xf32>
    %16 = vector.multi_reduction <add>, %8, %cst_15 [1] : vector<1x8x128xf32> to vector<1x128xf32>
    %17 = vector.shape_cast %16 : vector<1x128xf32> to vector<1x1x128xf32>
    %18 = arith.addf %15, %17 : vector<1x1x128xf32>
    %c0_16 = arith.constant 0 : index
    %c0_17 = arith.constant 0 : index
    %c0_18 = arith.constant 0 : index
    %19 = vector.load %arg6[%c0_16, %c0_17, %c0_18] : memref<1x1x128xf32, #tpu.memory_space<vmem>>, vector<1x1x128xf32>
    tpu.vector_store %arg6[%c0_16, %c0_17, %c0_18], %18 {strides = array<i32>} : memref<1x1x128xf32, #tpu.memory_space<vmem>>, vector<1x1x128xf32>,
    %c0_19 = arith.constant 0 : index
    %c0_20 = arith.constant 0 : index
    %c0_21 = arith.constant 0 : index
    %20 = vector.load %arg7[%c0_19, %c0_20, %c0_21] : memref<1x1x128xf32, #tpu.memory_space<vmem>>, vector<1x1x128xf32>
    %cst_22 = arith.constant dense<0.000000e+00> : vector<1x128xf32>
    %21 = vector.multi_reduction <add>, %9, %cst_22 [1] : vector<1x8x128xf32> to vector<1x128xf32>
    %22 = vector.shape_cast %21 : vector<1x128xf32> to vector<1x1x128xf32>
    %23 = arith.addf %20, %22 : vector<1x1x128xf32>
    %c0_23 = arith.constant 0 : index
    %c0_24 = arith.constant 0 : index
    %c0_25 = arith.constant 0 : index
    %24 = vector.load %arg7[%c0_23, %c0_24, %c0_25] : memref<1x1x128xf32, #tpu.memory_space<vmem>>, vector<1x1x128xf32>
    tpu.vector_store %arg7[%c0_23, %c0_24, %c0_25], %23 {strides = array<i32>} : memref<1x1x128xf32, #tpu.memory_space<vmem>>, vector<1x1x128xf32>,
    %c0_i32_26 = arith.constant 0 : i32
    %25 = arith.cmpi eq, %arg1, %c0_i32_26 : i32
    %26 = arith.extui %25 : i1 to i32
    %c0_i32_27 = arith.constant 0 : i32
    %27 = arith.cmpi ne, %26, %c0_i32_27 : i32
    scf.if %27 {
      %c0_28 = arith.constant 0 : index
      %c0_29 = arith.constant 0 : index
      %c0_30 = arith.constant 0 : index
      %28 = vector.load %arg5[%c0_28, %c0_29, %c0_30] : memref<1x1x128xf32, #tpu.memory_space<vmem>>, vector<1x1x128xf32>
      %cst_31 = arith.constant dense<0.000000e+00> : vector<1x1xf32>
      %29 = vector.multi_reduction <add>, %28, %cst_31 [2] : vector<1x1x128xf32> to vector<1x1xf32>
      %30 = vector.shape_cast %29 : vector<1x1xf32> to vector<1x1x1xf32>
      %c0_32 = arith.constant 0 : index
      %c0_33 = arith.constant 0 : index
      %c0_34 = arith.constant 0 : index
      %31 = vector.load %arg6[%c0_32, %c0_33, %c0_34] : memref<1x1x128xf32, #tpu.memory_space<vmem>>, vector<1x1x128xf32>
      %cst_35 = arith.constant dense<0.000000e+00> : vector<1x1xf32>
      %32 = vector.multi_reduction <add>, %31, %cst_35 [2] : vector<1x1x128xf32> to vector<1x1xf32>
      %33 = vector.shape_cast %32 : vector<1x1xf32> to vector<1x1x1xf32>
      %c0_36 = arith.constant 0 : index
      %c0_37 = arith.constant 0 : index
      %c0_38 = arith.constant 0 : index
      %34 = vector.load %arg7[%c0_36, %c0_37, %c0_38] : memref<1x1x128xf32, #tpu.memory_space<vmem>>, vector<1x1x128xf32>
      %cst_39 = arith.constant dense<0.000000e+00> : vector<1x1xf32>
      %35 = vector.multi_reduction <add>, %34, %cst_39 [2] : vector<1x1x128xf32> to vector<1x1xf32>
      %36 = vector.shape_cast %35 : vector<1x1xf32> to vector<1x1x1xf32>
      %cst_40 = arith.constant 9.77517105E-4 : f32
      %37 = vector.broadcast %cst_40 : f32 to vector<1x1x1xf32>
      %38 = arith.mulf %30, %37 : vector<1x1x1xf32>
      %39 = math.sqrt %38 : vector<1x1x1xf32>
      %40 = arith.mulf %39, %38 : vector<1x1x1xf32>
      %41 = arith.mulf %38, %38 : vector<1x1x1xf32>
      %cst_41 = arith.constant 9.765625E-4 : f32
      %42 = vector.broadcast %cst_41 : f32 to vector<1x1x1xf32>
      %43 = arith.mulf %33, %42 : vector<1x1x1xf32>
      %cst_42 = arith.constant 9.99999993E-9 : f32
      %44 = vector.broadcast %cst_42 : f32 to vector<1x1x1xf32>
      %45 = arith.addf %40, %44 : vector<1x1x1xf32>
      %46 = tpu.reciprocal %45 {approx = true} : vector<1x1x1xf32> -> vector<1x1x1xf32>
      %47 = arith.mulf %43, %46 : vector<1x1x1xf32>
      %cst_43 = arith.constant 9.765625E-4 : f32
      %48 = vector.broadcast %cst_43 : f32 to vector<1x1x1xf32>
      %49 = arith.mulf %36, %48 : vector<1x1x1xf32>
      %cst_44 = arith.constant 9.99999993E-9 : f32
      %50 = vector.broadcast %cst_44 : f32 to vector<1x1x1xf32>
      %51 = arith.addf %41, %50 : vector<1x1x1xf32>
      %52 = tpu.reciprocal %51 {approx = true} : vector<1x1x1xf32> -> vector<1x1x1xf32>
      %53 = arith.mulf %49, %52 : vector<1x1x1xf32>
      %54 = tpu.iota {dimensions = array<i32: 2>} : vector<1x1x128xi32>
      %c0_45 = arith.constant 0 : index
      %c0_46 = arith.constant 0 : index
      %c0_47 = arith.constant 0 : index
      %55 = vector.load %arg2[%c0_45, %c0_46, %c0_47] : memref<1x1x128xf32, #tpu.memory_space<vmem>>, vector<1x1x128xf32>
      %c0_i32_48 = arith.constant 0 : i32
      %56 = vector.broadcast %c0_i32_48 : i32 to vector<1x1x128xi32>
      %57 = arith.cmpi eq, %54, %56 : vector<1x1x128xi32>
      %c1_i32 = arith.constant 1 : i32
      %58 = vector.broadcast %c1_i32 : i32 to vector<1x1x128xi32>
      %59 = arith.cmpi eq, %54, %58 : vector<1x1x128xi32>
      %c2_i32 = arith.constant 2 : i32
      %60 = vector.broadcast %c2_i32 : i32 to vector<1x1x128xi32>
      %61 = arith.cmpi eq, %54, %60 : vector<1x1x128xi32>
      %c3_i32 = arith.constant 3 : i32
      %62 = vector.broadcast %c3_i32 : i32 to vector<1x1x128xi32>
      %63 = arith.cmpi eq, %54, %62 : vector<1x1x128xi32>
      %cst_49 = arith.constant 0.000000e+00 : f32
      %64 = vector.shape_cast %53 : vector<1x1x1xf32> to vector<1x1x1xf32>
      %65 = vector.broadcast %64 : vector<1x1x1xf32> to vector<1x1x128xf32>
      %66 = vector.broadcast %cst_49 : f32 to vector<1x1x128xf32>
      %67 = arith.select %63, %65, %66 : vector<1x1x128xi1>, vector<1x1x128xf32>
      %68 = vector.shape_cast %47 : vector<1x1x1xf32> to vector<1x1x1xf32>
      %69 = vector.broadcast %68 : vector<1x1x1xf32> to vector<1x1x128xf32>
      %70 = arith.select %61, %69, %67 : vector<1x1x128xi1>, vector<1x1x128xf32>
      %71 = vector.shape_cast %38 : vector<1x1x1xf32> to vector<1x1x1xf32>
      %72 = vector.broadcast %71 : vector<1x1x1xf32> to vector<1x1x128xf32>
      %73 = arith.select %59, %72, %70 : vector<1x1x128xi1>, vector<1x1x128xf32>
      %74 = arith.select %57, %55, %73 : vector<1x1x128xi1>, vector<1x1x128xf32>
      %c0_50 = arith.constant 0 : index
      %c0_51 = arith.constant 0 : index
      %c0_52 = arith.constant 0 : index
      %75 = vector.load %arg4[%c0_50, %c0_51, %c0_52] : memref<1x1x128xf32, #tpu.memory_space<vmem>>, vector<1x1x128xf32>
      tpu.vector_store %arg4[%c0_50, %c0_51, %c0_52], %74 {strides = array<i32>} : memref<1x1x128xf32, #tpu.memory_space<vmem>>, vector<1x1x128xf32>,
    } else {
    }
    return
  }
  func.func @transform_0(%arg0: i32, %arg1: i32) -> (i32, i32, i32) {
    %c0_i32 = arith.constant 0 : i32
    %c0_i32_0 = arith.constant 0 : i32
    %c0_i32_1 = arith.constant 0 : i32
    return %arg0, %c0_i32, %c0_i32_0 : i32, i32, i32
  }
  func.func @transform_1(%arg0: i32, %arg1: i32) -> (i32, i32, i32) {
    %c0_i32 = arith.constant 0 : i32
    %c0_i32_0 = arith.constant 0 : i32
    return %arg0, %arg1, %c0_i32 : i32, i32, i32
  }
  func.func @transform_2(%arg0: i32, %arg1: i32) -> (i32, i32, i32) {
    %c0_i32 = arith.constant 0 : i32
    %c0_i32_0 = arith.constant 0 : i32
    %c0_i32_1 = arith.constant 0 : i32
    return %arg0, %c0_i32, %c0_i32_0 : i32, i32, i32
  }
}

module attributes {stable_mosaic.version = 11 : i64} {
  func.func @_row_sum_kernel(%arg0: i32, %arg1: i32, %arg2: memref<1x8x128xf32, #tpu.memory_space<vmem>>, %arg3: memref<1x1x128xf32, #tpu.memory_space<vmem>>, %arg4: memref<1x1x128xf32, #tpu.memory_space<vmem>>) attributes {dimension_semantics = [#tpu.dimension_semantics<parallel>, #tpu.dimension_semantics<arbitrary>], iteration_bounds = array<i64: 2, 1>, scalar_prefetch = 0 : i64, scratch_operands = 1 : i64, tpu.core_type = #tpu.core_type<tc>, window_params = [{transform_indices = @transform_0, window_bounds = array<i64: 1, 8, 128>}, {transform_indices = @transform_1, window_bounds = array<i64: 1, 1, 128>}]} {
    %c0_i32 = arith.constant 0 : i32
    %0 = arith.cmpi eq, %arg1, %c0_i32 : i32
    %1 = arith.extui %0 : i1 to i32
    %c0_i32_0 = arith.constant 0 : i32
    %2 = arith.cmpi ne, %1, %c0_i32_0 : i32
    scf.if %2 {
      %cst_11 = arith.constant 0.000000e+00 : f32
      %12 = vector.broadcast %cst_11 : f32 to vector<1x1x128xf32>
      %c0_12 = arith.constant 0 : index
      %c0_13 = arith.constant 0 : index
      %c0_14 = arith.constant 0 : index
      %13 = vector.load %arg4[%c0_12, %c0_13, %c0_14] : memref<1x1x128xf32, #tpu.memory_space<vmem>>, vector<1x1x128xf32>
      tpu.vector_store %arg4[%c0_12, %c0_13, %c0_14], %12 {strides = array<i32>} : memref<1x1x128xf32, #tpu.memory_space<vmem>>, vector<1x1x128xf32>,
    } else {
    }
    %c0 = arith.constant 0 : index
    %c0_1 = arith.constant 0 : index
    %c0_2 = arith.constant 0 : index
    %3 = vector.load %arg2[%c0, %c0_1, %c0_2] : memref<1x8x128xf32, #tpu.memory_space<vmem>>, vector<1x8x128xf32>
    %c0_3 = arith.constant 0 : index
    %c0_4 = arith.constant 0 : index
    %c0_5 = arith.constant 0 : index
    %4 = vector.load %arg4[%c0_3, %c0_4, %c0_5] : memref<1x1x128xf32, #tpu.memory_space<vmem>>, vector<1x1x128xf32>
    %cst = arith.constant dense<0.000000e+00> : vector<1x128xf32>
    %5 = vector.multi_reduction <add>, %3, %cst [1] : vector<1x8x128xf32> to vector<1x128xf32>
    %6 = vector.shape_cast %5 : vector<1x128xf32> to vector<1x1x128xf32>
    %7 = arith.addf %4, %6 : vector<1x1x128xf32>
    %c0_6 = arith.constant 0 : index
    %c0_7 = arith.constant 0 : index
    %c0_8 = arith.constant 0 : index
    %8 = vector.load %arg4[%c0_6, %c0_7, %c0_8] : memref<1x1x128xf32, #tpu.memory_space<vmem>>, vector<1x1x128xf32>
    tpu.vector_store %arg4[%c0_6, %c0_7, %c0_8], %7 {strides = array<i32>} : memref<1x1x128xf32, #tpu.memory_space<vmem>>, vector<1x1x128xf32>,
    %c0_i32_9 = arith.constant 0 : i32
    %9 = arith.cmpi eq, %arg1, %c0_i32_9 : i32
    %10 = arith.extui %9 : i1 to i32
    %c0_i32_10 = arith.constant 0 : i32
    %11 = arith.cmpi ne, %10, %c0_i32_10 : i32
    scf.if %11 {
      %c0_11 = arith.constant 0 : index
      %c0_12 = arith.constant 0 : index
      %c0_13 = arith.constant 0 : index
      %12 = vector.load %arg4[%c0_11, %c0_12, %c0_13] : memref<1x1x128xf32, #tpu.memory_space<vmem>>, vector<1x1x128xf32>
      %cst_14 = arith.constant dense<0.000000e+00> : vector<1x1xf32>
      %13 = vector.multi_reduction <add>, %12, %cst_14 [2] : vector<1x1x128xf32> to vector<1x1xf32>
      %14 = vector.shape_cast %13 : vector<1x1xf32> to vector<1x1x1xf32>
      %cst_15 = arith.constant 9.765625E-4 : f32
      %15 = vector.broadcast %cst_15 : f32 to vector<1x1x1xf32>
      %16 = arith.mulf %14, %15 : vector<1x1x1xf32>
      %17 = vector.shape_cast %16 : vector<1x1x1xf32> to vector<1x1x1xf32>
      %18 = vector.broadcast %17 : vector<1x1x1xf32> to vector<1x1x128xf32>
      %c0_16 = arith.constant 0 : index
      %c0_17 = arith.constant 0 : index
      %c0_18 = arith.constant 0 : index
      %19 = vector.load %arg3[%c0_16, %c0_17, %c0_18] : memref<1x1x128xf32, #tpu.memory_space<vmem>>, vector<1x1x128xf32>
      tpu.vector_store %arg3[%c0_16, %c0_17, %c0_18], %18 {strides = array<i32>} : memref<1x1x128xf32, #tpu.memory_space<vmem>>, vector<1x1x128xf32>,
    } else {
    }
    return
  }
  func.func @transform_0(%arg0: i32, %arg1: i32) -> (i32, i32, i32) {
    %c0_i32 = arith.constant 0 : i32
    %c0_i32_0 = arith.constant 0 : i32
    return %arg0, %arg1, %c0_i32 : i32, i32, i32
  }
  func.func @transform_1(%arg0: i32, %arg1: i32) -> (i32, i32, i32) {
    %c0_i32 = arith.constant 0 : i32
    %c0_i32_0 = arith.constant 0 : i32
    %c0_i32_1 = arith.constant 0 : i32
    return %arg0, %c0_i32, %c0_i32_0 : i32, i32, i32
  }
}

</mosaic_0001>

<llo_original>
// kernel: _compute_moments.3
$region0: #{_compute_moments.3}
  #allocation0 [shape = 'u32[]', space=smem, size = 0x4, offset = 0x4, fixed_abs, tag = 'smem constant byte address 0x4 - core index']
  #allocation1 [shape = 'u32[144,128]{1,0:T(1,128)}', space=vmem, size = 0x12000, scoped, tag = 'internal scratch']
  #allocation2 [shape = 'f32[1,1,128]{2,1,0:T(1,128)}', space=vmem, size = 0x200, scoped, tag = 'scratch operand']
  #allocation3 [shape = 'f32[1,1,128]{2,1,0:T(1,128)}', space=vmem, size = 0x200, scoped, tag = 'scratch operand']
  #allocation4 [shape = 'f32[1,1,128]{2,1,0:T(1,128)}', space=vmem, size = 0x200, scoped, tag = 'scratch operand']
  %s0 = inlined_call_operand.vmem [shape: f32[2,1,128], index: 0, kind: input, shape index: {}]
  %s1 = inlined_call_operand.vmem [shape: f32[2,8,128], index: 1, kind: input, shape index: {}]
  %s2 = inlined_call_operand.hbm [shape: f32[2,1,128], index: 2, kind: output, shape index: {}]
  %s3 = sld [smem:[#allocation0]]
  $region49: #{_compute_moments.3} parent=0
    _
  %s5 = ssub.s32 1, %s3
  %s6 = scalar_select 0, %s5, %s3
  $region1: #{_compute_moments.3} parent=0
    #allocation5 [shape = 'u8[1024]{0}', space=vmem, size = 0x400, scoped, tag = 'output window, operand 0']
    #allocation6 [shape = 's32[2]{0}', space=sflag, size = 0x8, scoped, tag = 'scoped memory for _compute_moments.3']
    %7 = vsyncpa [#allocation6], 0
    %s8 = scalar_lea.sflag [#allocation6], 1
    %9 = vsyncpa %s8, 0
    loop: start=0, step=1, limit=4
    $region2: #{_compute_moments.3} parent=1 // loop_pre_header
      _
    $region3: #{_compute_moments.3} parent=1 // loop_header
      %s11 = sphi 0, %s15
      %p12 = scmp.ge.s32.totalorder %s11, 4
      %s18 = sphi 0, %s30
      %s19 = sphi 0, %s26
      %s20 = sphi 0, %s18
      %s21 = sphi 0, %s19
      %s22 = sphi 0, %s20
      %s23 = sphi 0, %s21
      %s33 = sphi 0, %s35
      %s36 = sphi 0, %s33
      %s37 = sphi 0, %s36
      %s53 = sphi 0, %s37
      %s61 = sphi 0, %s63
      %s64 = sphi 0, %s61
      %s65 = sphi 0, %s64
      %s81 = sphi 0, %s65
      %s87 = sphi 0, %s89
      %s90 = sphi 0, %s87
      %s91 = sphi 0, %s90
      %s107 = sphi 0, %s91
    $region4: #{_compute_moments.3} parent=1 // loop_header_branch
      %14 = sbr.rel (%p12) target = $region8
    $region5: #{_compute_moments.3} parent=1 // loop_body
      %s16 = ssub.s32 %s11, 1
      %s17 = ssub.s32 %s11, 2
      %s24 = sadd.s32 1, %s19
      %p25 = scmp.ge.s32.totalorder %s24, 1
      %s26 = scalar_select %p25, 0, %s24
      %s27 = sadd.s32 1, %s18
      %s28 = scalar_select %p25, %s27, %s18
      %p29 = scmp.ge.s32.totalorder %s28, 2
      %s30 = scalar_select %p29, 0, %s28
      %s31 = ssub.s32 %s18, %s30
      %p32 = scmp.eq.s32.totalorder %s31, 0
      %s34 = sadd.s32 %s33, 1
      %s35 = scalar_select %p32, %s33, %s34
      %p38 = pneg %p32
      %p39 = scmp.eq.s32.totalorder %s11, 1
      %p40 = por %p38, %p39
      %p41 = scmp.ne.s32.totalorder %s33, %s36
      %p42 = scmp.eq.s32.totalorder %s11, 0
      %p43 = por %p41, %p42
      %p44 = scmp.ne.s32.totalorder %s33, %s36
      %p45 = scmp.eq.s32.totalorder %s16, 1
      %p46 = por %p44, %p45
      %p47 = scmp.ne.s32.totalorder %s36, %s37
      %p48 = scmp.eq.s32.totalorder %s16, 0
      %p49 = por %p47, %p48
      %p50 = scmp.ne.s32.totalorder %s36, %s37
      %p51 = scmp.eq.s32.totalorder %s17, 1
      %p52 = por %p50, %p51
      %p54 = scmp.ne.s32.totalorder %s37, %s53
      %p55 = scmp.eq.s32.totalorder %s17, 0
      %p56 = por %p54, %p55
      %s57 = ssub.s32 %s18, %s30
      %s58 = ssub.s32 %s19, %s26
      %s59 = sor.u32 %s57, %s58
      %p60 = scmp.eq.s32.totalorder %s59, 0
      %s62 = sadd.s32 %s61, 1
      %s63 = scalar_select %p60, %s61, %s62
      %p66 = pneg %p60
      %p67 = scmp.eq.s32.totalorder %s11, 1
      %p68 = por %p66, %p67
      %p69 = scmp.ne.s32.totalorder %s61, %s64
      %p70 = scmp.eq.s32.totalorder %s11, 0
      %p71 = por %p69, %p70
      %p72 = scmp.ne.s32.totalorder %s61, %s64
      %p73 = scmp.eq.s32.totalorder %s16, 1
      %p74 = por %p72, %p73
      %p75 = scmp.ne.s32.totalorder %s64, %s65
      %p76 = scmp.eq.s32.totalorder %s16, 0
      %p77 = por %p75, %p76
      %p78 = scmp.ne.s32.totalorder %s64, %s65
      %p79 = scmp.eq.s32.totalorder %s17, 1
      %p80 = por %p78, %p79
      %p82 = scmp.ne.s32.totalorder %s65, %s81
      %p83 = scmp.eq.s32.totalorder %s17, 0
      %p84 = por %p82, %p83
      %s85 = ssub.s32 %s18, %s30
      %p86 = scmp.eq.s32.totalorder %s85, 0
      %s88 = sadd.s32 %s87, 1
      %s89 = scalar_select %p86, %s87, %s88
      %p92 = pneg %p86
      %p93 = scmp.eq.s32.totalorder %s11, 1
      %p94 = por %p92, %p93
      %p95 = scmp.ne.s32.totalorder %s87, %s90
      %p96 = scmp.eq.s32.totalorder %s11, 0
      %p97 = por %p95, %p96
      %p98 = scmp.ne.s32.totalorder %s87, %s90
      %p99 = scmp.eq.s32.totalorder %s16, 1
      %p100 = por %p98, %p99
      %p101 = scmp.ne.s32.totalorder %s90, %s91
      %p102 = scmp.eq.s32.totalorder %s16, 0
      %p103 = por %p101, %p102
      %p104 = scmp.ne.s32.totalorder %s90, %s91
      %p105 = scmp.eq.s32.totalorder %s17, 1
      %p106 = por %p104, %p105
      %p108 = scmp.ne.s32.totalorder %s91, %s107
      %p109 = scmp.eq.s32.totalorder %s17, 0
      %p110 = por %p108, %p109
      %p111 = scmp.le.s32.totalorder 1, %s11
      %p112 = scmp.lt.s32.totalorder %s11, 3
      %p113 = pnand %p111, %p112
      %p114 = pneg %p113
      // Predicated region
      $region9: #{_compute_moments.3} parent=5 // pred_check
        _
      $region10: #{_compute_moments.3} parent=5 // pred_check_branch
        %116 = sbr.rel (%p113) target = $region12
      $region11: #{_compute_moments.3} parent=5 // pred_region
        %s117 = ssub.s32 %s11, 1
      $region12: #{_compute_moments.3} parent=5 // pred_fallthru
        _
      %p118 = scmp.lt.s32.totalorder %s11, 2
      // Predicated region
      $region13: #{_compute_moments.3} parent=5 // pred_check
        %p119 = pneg %p118
      $region14: #{_compute_moments.3} parent=5 // pred_check_branch
        %121 = sbr.rel (%p119) target = $region16
      $region15: #{_compute_moments.3} parent=5 // pred_region
        // Predicated region
        $region17: #{_compute_moments.3} parent=15 // pred_check
          %p122 = pneg %p43
        $region18: #{_compute_moments.3} parent=15 // pred_check_branch
          %124 = sbr.rel (%p122) target = $region20
        $region19: #{_compute_moments.3} parent=15 // pred_region
          %p125 = scmp.lt.s32.totalorder %s18, 1
          %s126 = scalar_select %p125, %s18, 1
          %s127 = scalar_lea.vmem %s0, %s126
        $region20: #{_compute_moments.3} parent=15 // pred_fallthru
          _
        // Predicated region
        $region21: #{_compute_moments.3} parent=15 // pred_check
          %p128 = pneg %p71
        $region22: #{_compute_moments.3} parent=15 // pred_check_branch
          %130 = sbr.rel (%p128) target = $region24
        $region23: #{_compute_moments.3} parent=15 // pred_region
          %p131 = scmp.lt.s32.totalorder %s18, 1
          %s132 = scalar_select %p131, %s18, 1
          %p133 = scmp.lt.s32.totalorder %s19, 0
          %s134 = scalar_select %p133, %s19, 0
          %s135 = sadd.s32 %s134, %s132
          %s136 = smul.addr %s135, 8
          %s137 = scalar_lea.vmem %s1, %s136
        $region24: #{_compute_moments.3} parent=15 // pred_fallthru
          _
      $region16: #{_compute_moments.3} parent=5 // pred_fallthru
        _
      %p138 = scmp.le.s32.totalorder 1, %s11
      %p139 = scmp.lt.s32.totalorder %s11, 3
      %p140 = pnand %p138, %p139
      %p141 = pneg %p140
      // Predicated region
      $region25: #{_compute_moments.3} parent=5 // pred_check
        _
      $region26: #{_compute_moments.3} parent=5 // pred_check_branch
        %143 = sbr.rel (%p140) target = $region28
      $region27: #{_compute_moments.3} parent=5 // pred_region
        %s144 = ssub.s32 %s11, 1
        %p145 = scmp.lt.s32.totalorder %s20, 1
        %s146 = scalar_select %p145, %s20, 1
        %s147 = scalar_lea.vmem %s0, %s146
        %p148 = pneg %p49
        %p149 = pneg %p46
        %p150 = scmp.lt.s32.totalorder %s20, 1
        %s151 = scalar_select %p150, %s20, 1
        %p152 = scmp.lt.s32.totalorder %s21, 0
        %s153 = scalar_select %p152, %s21, 0
        %s154 = sadd.s32 %s153, %s151
        %s155 = smul.addr %s154, 8
        %s156 = scalar_lea.vmem %s1, %s155
        %p157 = pneg %p77
        %p158 = pneg %p74
        %p159 = pneg %p103
        %p160 = pneg %p100
        %s161 = sand.u32 %s90, 1
        %s162 = scalar_lea.sflag [#allocation6], %s161
        %s163 = sand.u32 %s90, 1
        %s164 = scalar_lea.vmem [#allocation5], %s163
        %p165 = scmp.lt.s32.totalorder %s20, 1
        %s166 = scalar_select %p165, %s20, 1
        %s167 = scalar_lea.vmem %s0, %s166
        %p168 = scmp.lt.s32.totalorder %s20, 1
        %s169 = scalar_select %p168, %s20, 1
        %p170 = scmp.lt.s32.totalorder %s21, 0
        %s171 = scalar_select %p170, %s21, 0
        %s172 = sadd.s32 %s171, %s169
        %s173 = smul.addr %s172, 8
        %s174 = scalar_lea.vmem %s1, %s173
        %p175 = scmp.eq.s32.totalorder %s21, 0
        // Predicated region
        $region29: #{_compute_moments.3} parent=27 // pred_check
          %p176 = pneg %p175
        $region30: #{_compute_moments.3} parent=27 // pred_check_branch
          %178 = sbr.rel (%p176) target = $region32
        $region31: #{_compute_moments.3} parent=27 // pred_region
          %179 = vst [vmem:[#allocation2] sm:$0x1] 0.0
          %180 = vst [vmem:[#allocation3] sm:$0x1] 0.0
          %181 = vst [vmem:[#allocation4] sm:$0x1] 0.0
        $region32: #{_compute_moments.3} parent=27 // pred_fallthru
          _
        %v182 = vld [vmem:[%s174] sm:$0xff]
        %v183 = vld [vmem:[%s167] sm:$0x1]
        %v185 = vlaneseq
        %v186 = vshrl.u32 %v185, 7
        %v187 = vsub.s32 0, %v186
        %v188 = vrot.slane %v183, %v187
        %v190 = vsub.f32 %v182, %v188
        %v191 = vmul.f32 %v190, %v190
        %v192 = vmul.f32 %v191, %v190
        %v193 = vmul.f32 %v191, %v191
        %v194 = vld [vmem:[#allocation2] sm:$0x1]
        %v195 = vrot.slane %v191, 4
        %v196 = vadd.f32 %v191, %v195
        %v197 = vrot.slane %v196, 2
        %v198 = vadd.f32 %v196, %v197
        %v199 = vrot.slane %v198, 1
        %v200 = vadd.f32 %v198, %v199
        %v201 = vadd.f32 %v194, %v200
        %202 = vst [vmem:[#allocation2] sm:$0x1] %v201
        %v203 = vld [vmem:[#allocation3] sm:$0x1]
        %v204 = vrot.slane %v192, 4
        %v205 = vadd.f32 %v192, %v204
        %v206 = vrot.slane %v205, 2
        %v207 = vadd.f32 %v205, %v206
        %v208 = vrot.slane %v207, 1
        %v209 = vadd.f32 %v207, %v208
        %v210 = vadd.f32 %v203, %v209
        %211 = vst [vmem:[#allocation3] sm:$0x1] %v210
        %v212 = vld [vmem:[#allocation4] sm:$0x1]
        %v213 = vrot.slane %v193, 4
        %v214 = vadd.f32 %v193, %v213
        %v215 = vrot.slane %v214, 2
        %v216 = vadd.f32 %v214, %v215
        %v217 = vrot.slane %v216, 1
        %v218 = vadd.f32 %v216, %v217
        %v219 = vadd.f32 %v212, %v218
        %220 = vst [vmem:[#allocation4] sm:$0x1] %v219
        // Predicated region
        $region33: #{_compute_moments.3} parent=27 // pred_check
          %p221 = pneg %p175
        $region34: #{_compute_moments.3} parent=27 // pred_check_branch
          %223 = sbr.rel (%p221) target = $region36
        $region35: #{_compute_moments.3} parent=27 // pred_region
          %v224 = vld [vmem:[#allocation2] sm:$0x1]
          %vm225 = vcmask 1040384
          %v226 = vsel %vm225, %v224, 0.0
          %227 = vadd.xlane.f32.xlu0 %v226
          %v228 = vpop.xlane.xlu0 %227
          %v229 = vld [vmem:[#allocation3] sm:$0x1]
          %v230 = vsel %vm225, %v229, 0.0
          %231 = vadd.xlane.f32.xlu0 %v230
          %v232 = vpop.xlane.xlu0 %231
          %v233 = vld [vmem:[#allocation4] sm:$0x1]
          %v234 = vsel %vm225, %v233, 0.0
          %235 = vadd.xlane.f32.xlu0 %v234
          %v236 = vpop.xlane.xlu0 %235
          %v237 = vmul.f32 %v228, 0.0009775171
          %v238 = vrsqrt.pop %v237
          %v239 = vmul.f32 %v237, %v238
          %vm240 = vcmp.eq.f32.partialorder %v237, inf
          %v241 = vsel %vm240, %v237, %v239
          %vm242 = vcmp.eq.f32.partialorder %v237, 0.0
          %v243 = vand.u32 %v237, 2147483648
          %v244 = vsel %vm242, %v243, %v241
          %v245 = vmul.f32 %v244, %v237
          %v246 = vmul.f32 %v237, %v237
          %v247 = vmul.f32 %v232, 0.0009765625
          %v248 = vadd.f32 %v245, 1e-08
          %v249 = vrcp.pop %v248
          %v250 = vmul.f32 %v247, %v249
          %v251 = vmul.f32 %v236, 0.0009765625
          %v252 = vadd.f32 %v246, 1e-08
          %v253 = vrcp.pop %v252
          %v254 = vmul.f32 %v251, %v253
          %v255 = vlaneseq
          %v256 = vand.u32 %v255, 127
          %v257 = vld [vmem:[%s167] sm:$0x1]
          %vm258 = vcmp.eq.s32.totalorder %v256, 0
          %vm259 = vcmp.eq.s32.totalorder %v256, 1
          %vm260 = vcmp.eq.s32.totalorder %v256, 2
          %vm261 = vcmp.eq.s32.totalorder %v256, 3
          %v262 = vsel %vm261, %v254, 0.0
          %v263 = vsel %vm260, %v250, %v262
          %v264 = vsel %vm259, %v237, %v263
          %v265 = vsel %vm258, %v257, %v264
          %266 = vst [vmem:[%s164] sm:$0x1] %v265
        $region36: #{_compute_moments.3} parent=27 // pred_fallthru
          _
        %s267 = sand.u32 %s90, 1
        %s268 = scalar_lea.sflag [#allocation6], %s267
        %s269 = sand.u32 %s90, 1
        %s270 = scalar_lea.vmem [#allocation5], %s269
        // Predicated region
        $region37: #{_compute_moments.3} parent=27 // pred_check
          %p271 = pneg %p100
        $region38: #{_compute_moments.3} parent=27 // pred_check_branch
          %273 = sbr.rel (%p271) target = $region40
        $region39: #{_compute_moments.3} parent=27 // pred_region
          %s275 = ssub.s32 16, 16
          %276 = vsyncadd %s268, %s275
          %s277 = smul.addr %s20, 16
          %s278 = scalar_lea.hbm %s2, %s277
          %s280 = sshll.u32 %s270, 4
          %s281 = int_to_ptr.vmem [resolvable:$true] %s280
          %283 = dma.vmem_to_hbm [thread:$0]  %s281, 16, %s278, %s268
        $region40: #{_compute_moments.3} parent=27 // pred_fallthru
          _
      $region28: #{_compute_moments.3} parent=5 // pred_fallthru
        _
      %p284 = scmp.le.s32.totalorder 2, %s11
      // Predicated region
      $region41: #{_compute_moments.3} parent=5 // pred_check
        %p285 = pneg %p284
      $region42: #{_compute_moments.3} parent=5 // pred_check_branch
        %287 = sbr.rel (%p285) target = $region44
      $region43: #{_compute_moments.3} parent=5 // pred_region
        %s288 = ssub.s32 %s11, 2
        // Predicated region
        $region45: #{_compute_moments.3} parent=43 // pred_check
          %p289 = pneg %p106
        $region46: #{_compute_moments.3} parent=43 // pred_check_branch
          %291 = sbr.rel (%p289) target = $region48
        $region47: #{_compute_moments.3} parent=43 // pred_region
          %s292 = sand.u32 %s91, 1
          %s293 = scalar_lea.sflag [#allocation6], %s292
          %s294 = sand.u32 %s91, 1
          %s295 = scalar_lea.vmem [#allocation5], %s294
          %296 = dma.done %s293, 16
        $region48: #{_compute_moments.3} parent=43 // pred_fallthru
          _
      $region44: #{_compute_moments.3} parent=5 // pred_fallthru
        _
    $region6: #{_compute_moments.3} parent=1 // loop_footer
      %s15 = sadd.s32 1, %s11
    $region7: #{_compute_moments.3} parent=1 // loop_footer_branch
      %10 = sbr.rel target = $region3
    $region8: #{_compute_moments.3} parent=1 // loop_exit
      _
    %297 = vsyncpa [#allocation6], 1
    %s298 = scalar_lea.sflag [#allocation6], 1
    %299 = vsyncpa %s298, 1

// kernel: _compute_moments.2
$region0: #{_compute_moments.2}
  #allocation0 [shape = 'u32[]', space=smem, size = 0x4, offset = 0x4, fixed_abs, tag = 'smem constant byte address 0x4 - core index']
  #allocation1 [shape = 'u32[144,128]{1,0:T(1,128)}', space=vmem, size = 0x12000, scoped, tag = 'internal scratch']
  #allocation2 [shape = 'f32[1,1,128]{2,1,0:T(1,128)}', space=vmem, size = 0x200, scoped, tag = 'scratch operand']
  %s0 = inlined_call_operand.vmem [shape: f32[2,8,128], index: 0, kind: input, shape index: {}]
  %s1 = inlined_call_operand.vmem [shape: f32[2,1,128], index: 1, kind: output, shape index: {}]
  %s2 = sld [smem:[#allocation0]]
  $region45: #{_compute_moments.2} parent=0
    _
  %s4 = ssub.s32 1, %s2
  %s5 = scalar_select 0, %s4, %s2
  loop: start=0, step=1, limit=4
  $region2: #{_compute_moments.2} parent=0 // loop_pre_header
    _
  $region3: #{_compute_moments.2} parent=0 // loop_header
    %s7 = sphi 0, %s11
    %p8 = scmp.ge.s32.totalorder %s7, 4
    %s14 = sphi 0, %s26
    %s15 = sphi 0, %s22
    %s16 = sphi 0, %s14
    %s17 = sphi 0, %s15
    %s18 = sphi 0, %s16
    %s19 = sphi 0, %s17
    %s31 = sphi 0, %s33
    %s34 = sphi 0, %s31
    %s35 = sphi 0, %s34
    %s51 = sphi 0, %s35
    %s57 = sphi 0, %s59
    %s60 = sphi 0, %s57
    %s61 = sphi 0, %s60
    %s77 = sphi 0, %s61
  $region4: #{_compute_moments.2} parent=0 // loop_header_branch
    %10 = sbr.rel (%p8) target = $region8
  $region5: #{_compute_moments.2} parent=0 // loop_body
    %s12 = ssub.s32 %s7, 1
    %s13 = ssub.s32 %s7, 2
    %s20 = sadd.s32 1, %s15
    %p21 = scmp.ge.s32.totalorder %s20, 1
    %s22 = scalar_select %p21, 0, %s20
    %s23 = sadd.s32 1, %s14
    %s24 = scalar_select %p21, %s23, %s14
    %p25 = scmp.ge.s32.totalorder %s24, 2
    %s26 = scalar_select %p25, 0, %s24
    %s27 = ssub.s32 %s14, %s26
    %s28 = ssub.s32 %s15, %s22
    %s29 = sor.u32 %s27, %s28
    %p30 = scmp.eq.s32.totalorder %s29, 0
    %s32 = sadd.s32 %s31, 1
    %s33 = scalar_select %p30, %s31, %s32
    %p36 = pneg %p30
    %p37 = scmp.eq.s32.totalorder %s7, 1
    %p38 = por %p36, %p37
    %p39 = scmp.ne.s32.totalorder %s31, %s34
    %p40 = scmp.eq.s32.totalorder %s7, 0
    %p41 = por %p39, %p40
    %p42 = scmp.ne.s32.totalorder %s31, %s34
    %p43 = scmp.eq.s32.totalorder %s12, 1
    %p44 = por %p42, %p43
    %p45 = scmp.ne.s32.totalorder %s34, %s35
    %p46 = scmp.eq.s32.totalorder %s12, 0
    %p47 = por %p45, %p46
    %p48 = scmp.ne.s32.totalorder %s34, %s35
    %p49 = scmp.eq.s32.totalorder %s13, 1
    %p50 = por %p48, %p49
    %p52 = scmp.ne.s32.totalorder %s35, %s51
    %p53 = scmp.eq.s32.totalorder %s13, 0
    %p54 = por %p52, %p53
    %s55 = ssub.s32 %s14, %s26
    %p56 = scmp.eq.s32.totalorder %s55, 0
    %s58 = sadd.s32 %s57, 1
    %s59 = scalar_select %p56, %s57, %s58
    %p62 = pneg %p56
    %p63 = scmp.eq.s32.totalorder %s7, 1
    %p64 = por %p62, %p63
    %p65 = scmp.ne.s32.totalorder %s57, %s60
    %p66 = scmp.eq.s32.totalorder %s7, 0
    %p67 = por %p65, %p66
    %p68 = scmp.ne.s32.totalorder %s57, %s60
    %p69 = scmp.eq.s32.totalorder %s12, 1
    %p70 = por %p68, %p69
    %p71 = scmp.ne.s32.totalorder %s60, %s61
    %p72 = scmp.eq.s32.totalorder %s12, 0
    %p73 = por %p71, %p72
    %p74 = scmp.ne.s32.totalorder %s60, %s61
    %p75 = scmp.eq.s32.totalorder %s13, 1
    %p76 = por %p74, %p75
    %p78 = scmp.ne.s32.totalorder %s61, %s77
    %p79 = scmp.eq.s32.totalorder %s13, 0
    %p80 = por %p78, %p79
    %p81 = scmp.le.s32.totalorder 1, %s7
    %p82 = scmp.lt.s32.totalorder %s7, 3
    %p83 = pnand %p81, %p82
    %p84 = pneg %p83
    // Predicated region
    $region9: #{_compute_moments.2} parent=5 // pred_check
      _
    $region10: #{_compute_moments.2} parent=5 // pred_check_branch
      %86 = sbr.rel (%p83) target = $region12
    $region11: #{_compute_moments.2} parent=5 // pred_region
      %s87 = ssub.s32 %s7, 1
    $region12: #{_compute_moments.2} parent=5 // pred_fallthru
      _
    %p88 = scmp.lt.s32.totalorder %s7, 2
    // Predicated region
    $region13: #{_compute_moments.2} parent=5 // pred_check
      %p89 = pneg %p88
    $region14: #{_compute_moments.2} parent=5 // pred_check_branch
      %91 = sbr.rel (%p89) target = $region16
    $region15: #{_compute_moments.2} parent=5 // pred_region
      // Predicated region
      $region17: #{_compute_moments.2} parent=15 // pred_check
        %p92 = pneg %p41
      $region18: #{_compute_moments.2} parent=15 // pred_check_branch
        %94 = sbr.rel (%p92) target = $region20
      $region19: #{_compute_moments.2} parent=15 // pred_region
        %p95 = scmp.lt.s32.totalorder %s14, 1
        %s96 = scalar_select %p95, %s14, 1
        %p97 = scmp.lt.s32.totalorder %s15, 0
        %s98 = scalar_select %p97, %s15, 0
        %s99 = sadd.s32 %s98, %s96
        %s100 = smul.addr %s99, 8
        %s101 = scalar_lea.vmem %s0, %s100
      $region20: #{_compute_moments.2} parent=15 // pred_fallthru
        _
    $region16: #{_compute_moments.2} parent=5 // pred_fallthru
      _
    %p102 = scmp.le.s32.totalorder 1, %s7
    %p103 = scmp.lt.s32.totalorder %s7, 3
    %p104 = pnand %p102, %p103
    %p105 = pneg %p104
    // Predicated region
    $region21: #{_compute_moments.2} parent=5 // pred_check
      _
    $region22: #{_compute_moments.2} parent=5 // pred_check_branch
      %107 = sbr.rel (%p104) target = $region24
    $region23: #{_compute_moments.2} parent=5 // pred_region
      %s108 = ssub.s32 %s7, 1
      %p109 = scmp.lt.s32.totalorder %s16, 1
      %s110 = scalar_select %p109, %s16, 1
      %p111 = scmp.lt.s32.totalorder %s17, 0
      %s112 = scalar_select %p111, %s17, 0
      %s113 = sadd.s32 %s112, %s110
      %s114 = smul.addr %s113, 8
      %s115 = scalar_lea.vmem %s0, %s114
      %p116 = pneg %p47
      %p117 = pneg %p44
      %p118 = pneg %p73
      %p119 = pneg %p70
      %p120 = scmp.lt.s32.totalorder %s16, 1
      %s121 = scalar_select %p120, %s16, 1
      %s122 = scalar_lea.vmem %s1, %s121
      %p123 = scmp.lt.s32.totalorder %s16, 1
      %s124 = scalar_select %p123, %s16, 1
      %p125 = scmp.lt.s32.totalorder %s17, 0
      %s126 = scalar_select %p125, %s17, 0
      %s127 = sadd.s32 %s126, %s124
      %s128 = smul.addr %s127, 8
      %s129 = scalar_lea.vmem %s0, %s128
      %p130 = scmp.lt.s32.totalorder %s16, 1
      %s131 = scalar_select %p130, %s16, 1
      %s132 = scalar_lea.vmem %s1, %s131
      %p133 = scmp.eq.s32.totalorder %s17, 0
      // Predicated region
      $region25: #{_compute_moments.2} parent=23 // pred_check
        %p134 = pneg %p133
      $region26: #{_compute_moments.2} parent=23 // pred_check_branch
        %136 = sbr.rel (%p134) target = $region28
      $region27: #{_compute_moments.2} parent=23 // pred_region
        %137 = vst [vmem:[#allocation2] sm:$0x1] 0.0
      $region28: #{_compute_moments.2} parent=23 // pred_fallthru
        _
      %v138 = vld [vmem:[%s129] sm:$0xff]
      %v139 = vld [vmem:[#allocation2] sm:$0x1]
      %v140 = vrot.slane %v138, 4
      %v141 = vadd.f32 %v138, %v140
      %v142 = vrot.slane %v141, 2
      %v143 = vadd.f32 %v141, %v142
      %v144 = vrot.slane %v143, 1
      %v145 = vadd.f32 %v143, %v144
      %v146 = vadd.f32 %v139, %v145
      %147 = vst [vmem:[#allocation2] sm:$0x1] %v146
      // Predicated region
      $region29: #{_compute_moments.2} parent=23 // pred_check
        %p148 = pneg %p133
      $region30: #{_compute_moments.2} parent=23 // pred_check_branch
        %150 = sbr.rel (%p148) target = $region32
      $region31: #{_compute_moments.2} parent=23 // pred_region
        %v151 = vld [vmem:[#allocation2] sm:$0x1]
        %vm152 = vcmask 1040384
        %v153 = vsel %vm152, %v151, 0.0
        %154 = vadd.xlane.f32.xlu0 %v153
        %v155 = vpop.xlane.xlu0 %154
        %v156 = vmul.f32 %v155, 0.0009765625
        %157 = vst [vmem:[%s132] sm:$0x1] %v156
      $region32: #{_compute_moments.2} parent=23 // pred_fallthru
        _
      %p158 = scmp.lt.s32.totalorder %s16, 1
      %s159 = scalar_select %p158, %s16, 1
      %s160 = scalar_lea.vmem %s1, %s159
      // Predicated region
      $region33: #{_compute_moments.2} parent=23 // pred_check
        %p161 = pneg %p70
      $region34: #{_compute_moments.2} parent=23 // pred_check_branch
        %163 = sbr.rel (%p161) target = $region36
      $region35: #{_compute_moments.2} parent=23 // pred_region
        _
      $region36: #{_compute_moments.2} parent=23 // pred_fallthru
        _
    $region24: #{_compute_moments.2} parent=5 // pred_fallthru
      _
    %p164 = scmp.le.s32.totalorder 2, %s7
    // Predicated region
    $region37: #{_compute_moments.2} parent=5 // pred_check
      %p165 = pneg %p164
    $region38: #{_compute_moments.2} parent=5 // pred_check_branch
      %167 = sbr.rel (%p165) target = $region40
    $region39: #{_compute_moments.2} parent=5 // pred_region
      %s168 = ssub.s32 %s7, 2
      // Predicated region
      $region41: #{_compute_moments.2} parent=39 // pred_check
        %p169 = pneg %p76
      $region42: #{_compute_moments.2} parent=39 // pred_check_branch
        %171 = sbr.rel (%p169) target = $region44
      $region43: #{_compute_moments.2} parent=39 // pred_region
        %p172 = scmp.lt.s32.totalorder %s18, 1
        %s173 = scalar_select %p172, %s18, 1
        %s174 = scalar_lea.vmem %s1, %s173
      $region44: #{_compute_moments.2} parent=39 // pred_fallthru
        _
    $region40: #{_compute_moments.2} parent=5 // pred_fallthru
      _
  $region6: #{_compute_moments.2} parent=0 // loop_footer
    %s11 = sadd.s32 1, %s7
  $region7: #{_compute_moments.2} parent=0 // loop_footer_branch
    %6 = sbr.rel target = $region3
  $region8: #{_compute_moments.2} parent=0 // loop_exit
    _

</llo_original>
